<compile_context>
chip_gen: v7x
topology: tpu7x:2x2x1
jax: 0.10.0
libtpu: 0.0.40
codegen_flags: <defaults>
</compile_context>

<pallas_src>
import functools

import jax
import jax.numpy as jnp
from jax.experimental import pallas as pl
from jax.experimental.pallas import tpu as pltpu

MARGIN = 0.5
SIZE_AVERAGE = True
COS_EPS = 1e-8  # matches torch.nn.functional.cosine_similarity eps

_MAX_TILE_ROWS = 512           # v7x-friendly cap (64 MiB VMEM per TC)
_INPUT_VMEM_BUDGET = 8 << 20   # bytes for 2 inputs x 2 pipeline buffers


def _round_up(x, m):
    return ((x + m - 1) // m) * m


def _pick_tile_rows(batch, hidden, itemsize):
    # 2 inputs x 2 pipeline buffers x TB x H x itemsize must stay under budget.
    per_row = 2 * 2 * hidden * itemsize
    tb = max(8, min(_MAX_TILE_ROWS, _INPUT_VMEM_BUDGET // max(per_row, 1)))
    tb = max(8, (tb // 8) * 8)                 # sublane multiple of 8
    return min(tb, _round_up(batch, 8))        # don't over-tile tiny batches


def _contrastive_loss_kernel(anchor_ref, other_ref, labels_ref, loss_ref, *,
                             batch, tile_rows, margin):
    i = pl.program_id(0)

    a = anchor_ref[...].astype(jnp.float32)      # (TB, H)
    b = other_ref[...].astype(jnp.float32)       # (TB, H)
    lab = labels_ref[...].astype(jnp.float32)    # (TB, 1)

    # Per-row cosine similarity (reduce over the lane / hidden axis).
    dot = jnp.sum(a * b, axis=-1, keepdims=True)            # (TB, 1)
    sa = jnp.sum(a * a, axis=-1, keepdims=True)              # (TB, 1)
    sb = jnp.sum(b * b, axis=-1, keepdims=True)              # (TB, 1)
    # torch clamps each *norm* at eps -> clamp squared sums at eps^2 and use
    # rsqrt (EUP slot, free while vld/VPU stream the mem-bound inner loop).
    inv_na = jax.lax.rsqrt(jnp.maximum(sa, COS_EPS * COS_EPS))
    inv_nb = jax.lax.rsqrt(jnp.maximum(sb, COS_EPS * COS_EPS))
    cos = dot * inv_na * inv_nb

    dist = 1.0 - cos                                          # COSINE_DISTANCE
    pos = lab * dist * dist
    neg = (1.0 - lab) * jnp.square(jnp.maximum(margin - dist, 0.0))
    losses = 0.5 * (pos + neg)                                # (TB, 1)

    # Zero out padded rows of a ragged final tile (select, not multiply, so any
    # garbage/NaN in the padded input rows is discarded).
    row = i * tile_rows + jax.lax.broadcasted_iota(jnp.int32, losses.shape, 0)
    loss_ref[...] = jnp.where(row < batch, losses, 0.0)


def contrastive_loss(rep_anchor, rep_other, labels, *,
                     margin=MARGIN, size_average=SIZE_AVERAGE):
    """rep_anchor / rep_other: (B, H) float32 or bfloat16; labels: (B,).

    Returns the scalar contrastive loss (mean if size_average else sum).
    """
    B, H = rep_anchor.shape
    tb = _pick_tile_rows(B, H, jnp.dtype(rep_anchor.dtype).itemsize)
    nt = pl.cdiv(B, tb)
    labels_2d = labels.astype(jnp.float32).reshape(B, 1)

    kernel = functools.partial(
        _contrastive_loss_kernel, batch=B, tile_rows=tb, margin=float(margin))

    per_row = pl.pallas_call(
        kernel,
        out_shape=jax.ShapeDtypeStruct((nt * tb, 1), jnp.float32),
        grid_spec=pltpu.PrefetchScalarGridSpec(
            num_scalar_prefetch=0,
            grid=(nt,),
            in_specs=[
                pl.BlockSpec((tb, H), lambda i: (i, 0)),
                pl.BlockSpec((tb, H), lambda i: (i, 0)),
                pl.BlockSpec((tb, 1), lambda i: (i, 0)),
            ],
            out_specs=pl.BlockSpec((tb, 1), lambda i: (i, 0)),
        ),
        compiler_params=pltpu.CompilerParams(
            dimension_semantics=("parallel",),
            vmem_limit_bytes=32 * 1024 * 1024,
        ),
    )(rep_anchor, rep_other, labels_2d)

    total = jnp.sum(per_row)      # padded rows are already zero
    return total / B if size_average else total


def _reference(rep_anchor, rep_other, labels, *,
               margin=MARGIN, size_average=SIZE_AVERAGE):
    a = rep_anchor.astype(jnp.float32)
    b = rep_other.astype(jnp.float32)
    lab = labels.astype(jnp.float32)
    dot = jnp.sum(a * b, axis=-1)
    na = jnp.maximum(jnp.linalg.norm(a, axis=-1), COS_EPS)
    nb = jnp.maximum(jnp.linalg.norm(b, axis=-1), COS_EPS)
    d = 1.0 - dot / (na * nb)
    losses = 0.5 * (lab * d**2 + (1.0 - lab) * jnp.maximum(margin - d, 0.0) ** 2)
    return jnp.mean(losses) if size_average else jnp.sum(losses)


if __name__ == "__main__":
    key = jax.random.PRNGKey(0)
    k1, k2, k3 = jax.random.split(key, 3)

    # Small, ragged batch (exercises the masked final tile: B=30, TB=32).
    B, H = 30, 128
    anchor = jax.random.normal(k1, (B, H), dtype=jnp.float32)
    other = jax.random.normal(k2, (B, H), dtype=jnp.float32)
    labels = jax.random.bernoulli(k3, p=0.5, shape=(B,)).astype(jnp.int32)

    loss = contrastive_loss(anchor, other, labels)
    jax.block_until_ready(loss)
    ref = _reference(anchor, other, labels)
    assert jnp.allclose(loss, ref, rtol=1e-5, atol=1e-5), (loss, ref)

    # Larger batch spanning several grid tiles (512-row tiles -> 3 tiles, ragged).
    B2, H2 = 1041, 256
    k4, k5, k6 = jax.random.split(jax.random.PRNGKey(1), 3)
    anchor2 = jax.random.normal(k4, (B2, H2), dtype=jnp.float32)
    other2 = jax.random.normal(k5, (B2, H2), dtype=jnp.float32)
    labels2 = jax.random.bernoulli(k6, p=0.5, shape=(B2,)).astype(jnp.int32)

    loss2 = contrastive_loss(anchor2, other2, labels2)
    jax.block_until_ready(loss2)
    ref2 = _reference(anchor2, other2, labels2)
    assert jnp.allclose(loss2, ref2, rtol=1e-5, atol=1e-5), (loss2, ref2)

    # bf16 inputs are accepted directly (halves HBM traffic); math stays f32.
    loss_bf16 = contrastive_loss(anchor2.astype(jnp.bfloat16),
                                 other2.astype(jnp.bfloat16), labels2)
    jax.block_until_ready(loss_bf16)
    ref_bf16 = _reference(anchor2.astype(jnp.bfloat16),
                          other2.astype(jnp.bfloat16), labels2)
    assert jnp.allclose(loss_bf16, ref_bf16, rtol=1e-3, atol=1e-3), (
        loss_bf16, ref_bf16)

    print("KERNEL_OK")
</pallas_src>

<mosaic_0001>
module attributes {stable_mosaic.version = 11 : i64} {
  func.func @_contrastive_loss_kernel(%arg0: i32, %arg1: memref<32x128xf32, #tpu.memory_space<vmem>>, %arg2: memref<32x128xf32, #tpu.memory_space<vmem>>, %arg3: memref<32x1xf32, #tpu.memory_space<vmem>>, %arg4: memref<32x1xf32, #tpu.memory_space<vmem>>) attributes {dimension_semantics = [#tpu.dimension_semantics<parallel>], iteration_bounds = array<i64: 1>, scalar_prefetch = 0 : i64, scratch_operands = 0 : i64, tpu.core_type = #tpu.core_type<tc>, window_params = [{transform_indices = @transform_0, window_bounds = array<i64: 32, 128>}, {transform_indices = @transform_1, window_bounds = array<i64: 32, 128>}, {transform_indices = @transform_2, window_bounds = array<i64: 32, 1>}, {transform_indices = @transform_3, window_bounds = array<i64: 32, 1>}]} {
    %c0 = arith.constant 0 : index
    %c0_0 = arith.constant 0 : index
    %0 = vector.load %arg1[%c0, %c0_0] : memref<32x128xf32, #tpu.memory_space<vmem>>, vector<32x128xf32>
    %c0_1 = arith.constant 0 : index
    %c0_2 = arith.constant 0 : index
    %1 = vector.load %arg2[%c0_1, %c0_2] : memref<32x128xf32, #tpu.memory_space<vmem>>, vector<32x128xf32>
    %c0_3 = arith.constant 0 : index
    %c0_4 = arith.constant 0 : index
    %2 = vector.load %arg3[%c0_3, %c0_4] : memref<32x1xf32, #tpu.memory_space<vmem>>, vector<32x1xf32>
    %3 = arith.mulf %0, %1 : vector<32x128xf32>
    %cst = arith.constant dense<0.000000e+00> : vector<32xf32>
    %4 = vector.multi_reduction <add>, %3, %cst [1] : vector<32x128xf32> to vector<32xf32>
    %5 = vector.shape_cast %4 : vector<32xf32> to vector<32x1xf32>
    %6 = arith.mulf %0, %0 : vector<32x128xf32>
    %cst_5 = arith.constant dense<0.000000e+00> : vector<32xf32>
    %7 = vector.multi_reduction <add>, %6, %cst_5 [1] : vector<32x128xf32> to vector<32xf32>
    %8 = vector.shape_cast %7 : vector<32xf32> to vector<32x1xf32>
    %9 = arith.mulf %1, %1 : vector<32x128xf32>
    %cst_6 = arith.constant dense<0.000000e+00> : vector<32xf32>
    %10 = vector.multi_reduction <add>, %9, %cst_6 [1] : vector<32x128xf32> to vector<32xf32>
    %11 = vector.shape_cast %10 : vector<32xf32> to vector<32x1xf32>
    %cst_7 = arith.constant 1.000000e-16 : f32
    %12 = vector.broadcast %cst_7 : f32 to vector<32x1xf32>
    %13 = arith.maximumf %8, %12 : vector<32x1xf32>
    %14 = math.rsqrt %13 : vector<32x1xf32>
    %cst_8 = arith.constant 1.000000e-16 : f32
    %15 = vector.broadcast %cst_8 : f32 to vector<32x1xf32>
    %16 = arith.maximumf %11, %15 : vector<32x1xf32>
    %17 = math.rsqrt %16 : vector<32x1xf32>
    %18 = arith.mulf %5, %14 : vector<32x1xf32>
    %19 = arith.mulf %18, %17 : vector<32x1xf32>
    %cst_9 = arith.constant 1.000000e+00 : f32
    %20 = vector.broadcast %cst_9 : f32 to vector<32x1xf32>
    %21 = arith.subf %20, %19 : vector<32x1xf32>
    %22 = arith.mulf %2, %21 : vector<32x1xf32>
    %23 = arith.mulf %22, %21 : vector<32x1xf32>
    %cst_10 = arith.constant 1.000000e+00 : f32
    %24 = vector.broadcast %cst_10 : f32 to vector<32x1xf32>
    %25 = arith.subf %24, %2 : vector<32x1xf32>
    %cst_11 = arith.constant 5.000000e-01 : f32
    %26 = vector.broadcast %cst_11 : f32 to vector<32x1xf32>
    %27 = arith.subf %26, %21 : vector<32x1xf32>
    %cst_12 = arith.constant 0.000000e+00 : f32
    %28 = vector.broadcast %cst_12 : f32 to vector<32x1xf32>
    %29 = arith.maximumf %27, %28 : vector<32x1xf32>
    %30 = arith.mulf %29, %29 : vector<32x1xf32>
    %31 = arith.mulf %25, %30 : vector<32x1xf32>
    %32 = arith.addf %23, %31 : vector<32x1xf32>
    %cst_13 = arith.constant 5.000000e-01 : f32
    %33 = vector.broadcast %cst_13 : f32 to vector<32x1xf32>
    %34 = arith.mulf %33, %32 : vector<32x1xf32>
    %c32_i32 = arith.constant 32 : i32
    %35 = arith.muli %arg0, %c32_i32 : i32
    %36 = tpu.iota {dimensions = array<i32: 0>} : vector<32x1xi32>
    %37 = vector.broadcast %35 : i32 to vector<32x1xi32>
    %38 = arith.addi %37, %36 : vector<32x1xi32>
    %c30_i32 = arith.constant 30 : i32
    %39 = vector.broadcast %c30_i32 : i32 to vector<32x1xi32>
    %40 = arith.cmpi slt, %38, %39 : vector<32x1xi32>
    %cst_14 = arith.constant 0.000000e+00 : f32
    %41 = vector.broadcast %cst_14 : f32 to vector<32x1xf32>
    %42 = arith.select %40, %34, %41 : vector<32x1xi1>, vector<32x1xf32>
    %c0_15 = arith.constant 0 : index
    %c0_16 = arith.constant 0 : index
    %43 = vector.load %arg4[%c0_15, %c0_16] : memref<32x1xf32, #tpu.memory_space<vmem>>, vector<32x1xf32>
    tpu.vector_store %arg4[%c0_15, %c0_16], %42 {strides = array<i32>} : memref<32x1xf32, #tpu.memory_space<vmem>>, vector<32x1xf32>,
    return
  }
  func.func @transform_0(%arg0: i32) -> (i32, i32) {
    %c0_i32 = arith.constant 0 : i32
    %c0_i32_0 = arith.constant 0 : i32
    return %arg0, %c0_i32 : i32, i32
  }
  func.func @transform_1(%arg0: i32) -> (i32, i32) {
    %c0_i32 = arith.constant 0 : i32
    %c0_i32_0 = arith.constant 0 : i32
    return %arg0, %c0_i32 : i32, i32
  }
  func.func @transform_2(%arg0: i32) -> (i32, i32) {
    %c0_i32 = arith.constant 0 : i32
    %c0_i32_0 = arith.constant 0 : i32
    return %arg0, %c0_i32 : i32, i32
  }
  func.func @transform_3(%arg0: i32) -> (i32, i32) {
    %c0_i32 = arith.constant 0 : i32
    %c0_i32_0 = arith.constant 0 : i32
    return %arg0, %c0_i32 : i32, i32
  }
}

</mosaic_0001>

<llo_original>
// kernel: tpu_custom_call.1
$region0: #{tpu_custom_call.1}
  #allocation0 [shape = 'u32[]', space=smem, size = 0x4, offset = 0x4, fixed_abs, tag = 'smem constant byte address 0x4 - core index']
  #allocation1 [shape = 'u32[144,128]{1,0:T(1,128)}', space=vmem, size = 0x12000, scoped, tag = 'internal scratch']
  %s0 = inlined_call_operand.vmem [shape: f32[30,128], index: 0, kind: input, shape index: {}]
  %s1 = inlined_call_operand.hbm [shape: f32[30,128], index: 1, kind: input, shape index: {}]
  %s2 = inlined_call_operand.vmem [shape: f32[30,1], index: 2, kind: input, shape index: {}]
  %s3 = inlined_call_operand.vmem [shape: f32[32,1], index: 3, kind: output, shape index: {}]
  %s4 = sld [smem:[#allocation0]]
  $region26: #{tpu_custom_call.1} parent=0
    _
  %s6 = ssub.s32 1, %s4
  %s7 = scalar_select 0, %s6, %s4
  $region1: #{tpu_custom_call.1} parent=0
    #allocation2 [shape = 'u8[16384]{0}', space=vmem, size = 0x4000, scoped, tag = 'input window, operand 1, single buffered']
    #allocation3 [shape = 's32[1]{0}', space=sflag, size = 0x4, scoped, tag = 'scoped memory for tpu_custom_call.1']
    %8 = vsyncpa [#allocation3], 0
    // Predicated region
    $region2: #{tpu_custom_call.1} parent=1 // pred_check
      _
    $region3: #{tpu_custom_call.1} parent=1 // pred_check_branch
      %10 = sbr.rel (0) target = $region5
    $region4: #{tpu_custom_call.1} parent=1 // pred_region
      _
    $region5: #{tpu_custom_call.1} parent=1 // pred_fallthru
      _
    // Predicated region
    $region6: #{tpu_custom_call.1} parent=1 // pred_check
      _
    $region7: #{tpu_custom_call.1} parent=1 // pred_check_branch
      %12 = sbr.rel (0) target = $region9
    $region8: #{tpu_custom_call.1} parent=1 // pred_region
      %s14 = ssub.s32 512, 512
      %15 = vsyncadd [#allocation3], %s14
      %s16 = sshll.u32 [#allocation2], 4
      %s17 = int_to_ptr.vmem [resolvable:$true] %s16
      %22 = dma.hbm_to_vmem [thread:$0]  %s1, 512, %s17, [#allocation3], 128, 128, 8
    $region9: #{tpu_custom_call.1} parent=1 // pred_fallthru
      _
    // Predicated region
    $region10: #{tpu_custom_call.1} parent=1 // pred_check
      _
    $region11: #{tpu_custom_call.1} parent=1 // pred_check_branch
      %24 = sbr.rel (0) target = $region13
    $region12: #{tpu_custom_call.1} parent=1 // pred_region
      _
    $region13: #{tpu_custom_call.1} parent=1 // pred_fallthru
      _
    // Predicated region
    $region14: #{tpu_custom_call.1} parent=1 // pred_check
      _
    $region15: #{tpu_custom_call.1} parent=1 // pred_check_branch
      %26 = sbr.rel (0) target = $region17
    $region16: #{tpu_custom_call.1} parent=1 // pred_region
      %27 = dma.done [#allocation3], 512
    $region17: #{tpu_custom_call.1} parent=1 // pred_fallthru
      _
    %v28 = vld [vmem:[%s0] sm:$0xff]
    %v29 = vld [vmem:[%s0 + $0x8] sm:$0xff]
    %v30 = vld [vmem:[%s0 + $0x10] sm:$0xff]
    %v31 = vld [vmem:[%s0 + $0x18] sm:$0xff]
    %v32 = vld [vmem:[#allocation2] sm:$0xff]
    %v33 = vld [vmem:[#allocation2 + $0x8] sm:$0xff]
    %v34 = vld [vmem:[#allocation2 + $0x10] sm:$0xff]
    %v35 = vld [vmem:[#allocation2 + $0x18] sm:$0xff]
    %v36 = vld [vmem:[%s2] sm:$0xff]
    %v37 = vld [vmem:[%s2 + $0x8] sm:$0xff]
    %v38 = vld [vmem:[%s2 + $0x10] sm:$0xff]
    %v39 = vld [vmem:[%s2 + $0x18] sm:$0xff]
    %v40 = vmul.f32 %v28, %v32
    %v41 = vmul.f32 %v29, %v33
    %v42 = vmul.f32 %v30, %v34
    %v43 = vmul.f32 %v31, %v35
    %44 = vadd.xlane.f32.xlu0 %v40
    %v45 = vpop.xlane.xlu0 %44
    %46 = vadd.xlane.f32.xlu0 %v41
    %v47 = vpop.xlane.xlu0 %46
    %48 = vadd.xlane.f32.xlu0 %v42
    %v49 = vpop.xlane.xlu0 %48
    %50 = vadd.xlane.f32.xlu0 %v43
    %v51 = vpop.xlane.xlu0 %50
    %v52 = vmul.f32 %v28, %v28
    %v53 = vmul.f32 %v29, %v29
    %v54 = vmul.f32 %v30, %v30
    %v55 = vmul.f32 %v31, %v31
    %56 = vadd.xlane.f32.xlu0 %v52
    %v57 = vpop.xlane.xlu0 %56
    %58 = vadd.xlane.f32.xlu0 %v53
    %v59 = vpop.xlane.xlu0 %58
    %60 = vadd.xlane.f32.xlu0 %v54
    %v61 = vpop.xlane.xlu0 %60
    %62 = vadd.xlane.f32.xlu0 %v55
    %v63 = vpop.xlane.xlu0 %62
    %v64 = vmul.f32 %v32, %v32
    %v65 = vmul.f32 %v33, %v33
    %v66 = vmul.f32 %v34, %v34
    %v67 = vmul.f32 %v35, %v35
    %68 = vadd.xlane.f32.xlu0 %v64
    %v69 = vpop.xlane.xlu0 %68
    %70 = vadd.xlane.f32.xlu0 %v65
    %v71 = vpop.xlane.xlu0 %70
    %72 = vadd.xlane.f32.xlu0 %v66
    %v73 = vpop.xlane.xlu0 %72
    %74 = vadd.xlane.f32.xlu0 %v67
    %v75 = vpop.xlane.xlu0 %74
    %v76 = vmax.f32 %v57, 1e-16
    %v77 = vmax.f32 %v59, 1e-16
    %v78 = vmax.f32 %v61, 1e-16
    %v79 = vmax.f32 %v63, 1e-16
    %v80 = vrsqrt.pop %v76
    %v81 = vrsqrt.pop %v77
    %v82 = vrsqrt.pop %v78
    %v83 = vrsqrt.pop %v79
    %v84 = vmax.f32 %v69, 1e-16
    %v85 = vmax.f32 %v71, 1e-16
    %v86 = vmax.f32 %v73, 1e-16
    %v87 = vmax.f32 %v75, 1e-16
    %v88 = vrsqrt.pop %v84
    %v89 = vrsqrt.pop %v85
    %v90 = vrsqrt.pop %v86
    %v91 = vrsqrt.pop %v87
    %v92 = vmul.f32 %v45, %v80
    %v93 = vmul.f32 %v47, %v81
    %v94 = vmul.f32 %v49, %v82
    %v95 = vmul.f32 %v51, %v83
    %v96 = vmul.f32 %v92, %v88
    %v97 = vmul.f32 %v93, %v89
    %v98 = vmul.f32 %v94, %v90
    %v99 = vmul.f32 %v95, %v91
    %v100 = vsub.f32 1.0, %v96
    %v101 = vsub.f32 1.0, %v97
    %v102 = vsub.f32 1.0, %v98
    %v103 = vsub.f32 1.0, %v99
    %v104 = vmul.f32 %v36, %v100
    %v105 = vmul.f32 %v37, %v101
    %v106 = vmul.f32 %v38, %v102
    %v107 = vmul.f32 %v39, %v103
    %v108 = vmul.f32 %v104, %v100
    %v109 = vmul.f32 %v105, %v101
    %v110 = vmul.f32 %v106, %v102
    %v111 = vmul.f32 %v107, %v103
    %v112 = vsub.f32 1.0, %v36
    %v113 = vsub.f32 1.0, %v37
    %v114 = vsub.f32 1.0, %v38
    %v115 = vsub.f32 1.0, %v39
    %v116 = vsub.f32 0.5, %v100
    %v117 = vsub.f32 0.5, %v101
    %v118 = vsub.f32 0.5, %v102
    %v119 = vsub.f32 0.5, %v103
    %v120 = vmax.f32 %v116, 0.0
    %v121 = vmax.f32 %v117, 0.0
    %v122 = vmax.f32 %v118, 0.0
    %v123 = vmax.f32 %v119, 0.0
    %v124 = vmul.f32 %v120, %v120
    %v125 = vmul.f32 %v121, %v121
    %v126 = vmul.f32 %v122, %v122
    %v127 = vmul.f32 %v123, %v123
    %v128 = vmul.f32 %v112, %v124
    %v129 = vmul.f32 %v113, %v125
    %v130 = vmul.f32 %v114, %v126
    %v131 = vmul.f32 %v115, %v127
    %v132 = vadd.f32 %v108, %v128
    %v133 = vadd.f32 %v109, %v129
    %v134 = vadd.f32 %v110, %v130
    %v135 = vadd.f32 %v111, %v131
    %v136 = vmul.f32 %v132, 0.5
    %v137 = vmul.f32 %v133, 0.5
    %v138 = vmul.f32 %v134, 0.5
    %v139 = vmul.f32 %v135, 0.5
    %s140 = smul.u32 0, 32
    %v141 = vlaneseq
    %v142 = vshrl.u32 %v141, 7
    %v143 = vadd.s32 %v142, 8
    %v144 = vadd.s32 %v142, 16
    %v145 = vadd.s32 %v142, 24
    %v146 = vstv %s140
    %v147 = vadd.s32 %v146, %v142
    %v148 = vadd.s32 %v146, %v143
    %v149 = vadd.s32 %v146, %v144
    %v150 = vadd.s32 %v146, %v145
    %vm151 = vcmp.lt.s32.totalorder %v147, 30
    %vm152 = vcmp.lt.s32.totalorder %v148, 30
    %vm153 = vcmp.lt.s32.totalorder %v149, 30
    %vm154 = vcmp.lt.s32.totalorder %v150, 30
    %v155 = vsel %vm151, %v136, 0.0
    %v156 = vsel %vm152, %v137, 0.0
    %v157 = vsel %vm153, %v138, 0.0
    %v158 = vsel %vm154, %v139, 0.0
    %vm159 = vcmask 7168
    %160 = vst.msk [vmem:[%s3] sm:$0xff] %vm159, %v155
    %161 = vst.msk [vmem:[%s3 + $0x8] sm:$0xff] %vm159, %v156
    %162 = vst.msk [vmem:[%s3 + $0x10] sm:$0xff] %vm159, %v157
    %163 = vst.msk [vmem:[%s3 + $0x18] sm:$0xff] %vm159, %v158
    // Predicated region
    $region18: #{tpu_custom_call.1} parent=1 // pred_check
      _
    $region19: #{tpu_custom_call.1} parent=1 // pred_check_branch
      %165 = sbr.rel (0) target = $region21
    $region20: #{tpu_custom_call.1} parent=1 // pred_region
      _
    $region21: #{tpu_custom_call.1} parent=1 // pred_fallthru
      _
    // Predicated region
    $region22: #{tpu_custom_call.1} parent=1 // pred_check
      _
    $region23: #{tpu_custom_call.1} parent=1 // pred_check_branch
      %167 = sbr.rel (0) target = $region25
    $region24: #{tpu_custom_call.1} parent=1 // pred_region
      _
    $region25: #{tpu_custom_call.1} parent=1 // pred_fallthru
      _
    %168 = vsyncpa [#allocation3], 1

</llo_original>
